<compile_context>
chip_gen: v7x
topology: tpu7x:2x2x1
jax: 0.10.0
libtpu: 0.0.40
codegen_flags: <defaults>
</compile_context>

<pallas_src>
import functools

import jax
import jax.numpy as jnp
from jax.experimental import pallas as pl
from jax.experimental.pallas import tpu as pltpu

# ---------------- configuration (small shapes implied by the module) ---------
OBS_DIM = 16
ACT_DIM = 4
HIDDEN_SIZES = (32, 32)          # at least one hidden layer assumed
LANE = 128                       # pad the 1-wide head output to a dense lane slab


# ---------------- fused Pallas kernel ----------------------------------------
def _qfunc_kernel(obs_ref, act_ref, *refs, num_layers):
    """refs = [w0_obs, w0_act, b0, w1, b1, ..., w_{L-1}, b_{L-1}, out_ref].

    Layer 0 consumes obs/act separately (split weight == cat([obs,act]) @ W0).
    ReLU on every layer except the last (output_activation = Identity).
    The last weight/bias are zero-padded to LANE columns; column 0 is q.
    """
    o_ref = refs[-1]
    wb = refs[:-1]

    h = (jnp.dot(obs_ref[...], wb[0][...], preferred_element_type=jnp.float32)
         + jnp.dot(act_ref[...], wb[1][...], preferred_element_type=jnp.float32)
         + wb[2][...])
    h = jnp.maximum(h, 0.0)

    k = 3
    for j in range(1, num_layers):
        h = jnp.dot(h, wb[k][...], preferred_element_type=jnp.float32) + wb[k + 1][...]
        if j < num_layers - 1:
            h = jnp.maximum(h, 0.0)
        k += 2

    o_ref[...] = h


# ---------------- parameter prep (done once, outside the hot path) -----------
def prepare_params(params):
    """Torch-layout (out,in)/(out,) -> kernel-layout operand list.

    * transpose weights to (in, out)
    * split the first weight into obs / act row blocks (removes the concat)
    * zero-pad the final (width-1) weight & bias to LANE columns (lane-dense store)
    """
    layers = params["layers"]
    num_layers = len(layers)
    assert num_layers >= 2, "expects at least one hidden layer"

    w0, b0 = layers[0]
    w0t = jnp.asarray(w0, jnp.float32).T                    # (obs+act, h0)
    ops = [w0t[:OBS_DIM], w0t[OBS_DIM:], jnp.asarray(b0, jnp.float32).reshape(1, -1)]

    for j in range(1, num_layers):
        w, b = layers[j]
        wt = jnp.asarray(w, jnp.float32).T                  # (in, out)
        bt = jnp.asarray(b, jnp.float32).reshape(1, -1)
        if j == num_layers - 1:
            pad = LANE - wt.shape[1]
            wt = jnp.pad(wt, ((0, 0), (0, pad)))
            bt = jnp.pad(bt, ((0, 0), (0, pad)))
        ops += [wt, bt]
    return ops, num_layers


# ---------------- wrapper -----------------------------------------------------
def mlp_q_forward(obs, act, prepared):
    ops, num_layers = prepared
    B = obs.shape[0]

    # Single batch block at small B; tile (and shard across cores) at large B.
    block_b = 128 if (B > 128 and B % 128 == 0) else B
    grid = (B // block_b,)

    in_specs = [
        pl.BlockSpec((block_b, OBS_DIM), lambda i: (i, 0)),
        pl.BlockSpec((block_b, ACT_DIM), lambda i: (i, 0)),
    ]
    for a in ops:
        in_specs.append(pl.BlockSpec(a.shape, lambda i: (0, 0)))

    kernel = functools.partial(_qfunc_kernel, num_layers=num_layers)
    out_padded = pl.pallas_call(
        kernel,
        out_shape=jax.ShapeDtypeStruct((B, LANE), jnp.float32),
        grid=grid,
        in_specs=in_specs,
        out_specs=pl.BlockSpec((block_b, LANE), lambda i: (i, 0)),
        compiler_params=pltpu.CompilerParams(dimension_semantics=("parallel",)),
    )(obs, act, *ops)

    return out_padded[:, 0]                                  # torch.squeeze(q, -1)


# ---------------- pure-JAX reference ------------------------------------------
def reference_forward(obs, act, params):
    h = jnp.concatenate([obs, act], axis=-1)
    layers = params["layers"]
    for j, (w, b) in enumerate(layers):
        h = h @ w.T + b
        if j < len(layers) - 1:
            h = jnp.maximum(h, 0.0)
    return jnp.squeeze(h, -1)


# ---------------- init (PyTorch Linear default: uniform +/- 1/sqrt(fan_in)) ---
def init_params(key):
    sizes = [OBS_DIM + ACT_DIM] + list(HIDDEN_SIZES) + [1]
    layers = []
    for j in range(len(sizes) - 1):
        key, k1, k2 = jax.random.split(key, 3)
        fan_in, fan_out = sizes[j], sizes[j + 1]
        bound = fan_in ** -0.5
        w = jax.random.uniform(k1, (fan_out, fan_in), jnp.float32, -bound, bound)
        b = jax.random.uniform(k2, (fan_out,), jnp.float32, -bound, bound)
        layers.append((w, b))
    return {"layers": layers}


if __name__ == "__main__":
    key = jax.random.PRNGKey(0)
    ko, ka, kp = jax.random.split(key, 3)

    B = 2
    obs = jax.random.normal(ko, (B, OBS_DIM), jnp.float32)
    act = jax.random.normal(ka, (B, ACT_DIM), jnp.float32)
    params = init_params(kp)

    prepared = prepare_params(params)
    out = jax.block_until_ready(mlp_q_forward(obs, act, prepared))
    ref = jax.block_until_ready(reference_forward(obs, act, params))

    assert out.shape == (B,), out.shape
    assert jnp.allclose(out, ref, atol=1e-5, rtol=1e-5), float(jnp.abs(out - ref).max())
    print("KERNEL_OK")
</pallas_src>

<mosaic_0001>
module attributes {stable_mosaic.version = 11 : i64} {
  func.func @_qfunc_kernel(%arg0: i32, %arg1: memref<2x16xf32, #tpu.memory_space<vmem>>, %arg2: memref<2x4xf32, #tpu.memory_space<vmem>>, %arg3: memref<16x32xf32, #tpu.memory_space<vmem>>, %arg4: memref<4x32xf32, #tpu.memory_space<vmem>>, %arg5: memref<1x32xf32, #tpu.memory_space<vmem>>, %arg6: memref<32x32xf32, #tpu.memory_space<vmem>>, %arg7: memref<1x32xf32, #tpu.memory_space<vmem>>, %arg8: memref<32x128xf32, #tpu.memory_space<vmem>>, %arg9: memref<1x128xf32, #tpu.memory_space<vmem>>, %arg10: memref<2x128xf32, #tpu.memory_space<vmem>>) attributes {dimension_semantics = [#tpu.dimension_semantics<parallel>], iteration_bounds = array<i64: 1>, scalar_prefetch = 0 : i64, scratch_operands = 0 : i64, tpu.core_type = #tpu.core_type<tc>, window_params = [{transform_indices = @transform_0, window_bounds = array<i64: 2, 16>}, {transform_indices = @transform_1, window_bounds = array<i64: 2, 4>}, {pipeline_mode = #tpu.pipeline_mode<synchronous>, transform_indices = @transform_2, window_bounds = array<i64: 16, 32>}, {pipeline_mode = #tpu.pipeline_mode<synchronous>, transform_indices = @transform_3, window_bounds = array<i64: 4, 32>}, {pipeline_mode = #tpu.pipeline_mode<synchronous>, transform_indices = @transform_4, window_bounds = array<i64: 1, 32>}, {pipeline_mode = #tpu.pipeline_mode<synchronous>, transform_indices = @transform_5, window_bounds = array<i64: 32, 32>}, {pipeline_mode = #tpu.pipeline_mode<synchronous>, transform_indices = @transform_6, window_bounds = array<i64: 1, 32>}, {pipeline_mode = #tpu.pipeline_mode<synchronous>, transform_indices = @transform_7, window_bounds = array<i64: 32, 128>}, {pipeline_mode = #tpu.pipeline_mode<synchronous>, transform_indices = @transform_8, window_bounds = array<i64: 1, 128>}, {transform_indices = @transform_9, window_bounds = array<i64: 2, 128>}]} {
    %c0 = arith.constant 0 : index
    %c0_0 = arith.constant 0 : index
    %0 = vector.load %arg1[%c0, %c0_0] : memref<2x16xf32, #tpu.memory_space<vmem>>, vector<2x16xf32>
    %c0_1 = arith.constant 0 : index
    %c0_2 = arith.constant 0 : index
    %1 = vector.load %arg3[%c0_1, %c0_2] : memref<16x32xf32, #tpu.memory_space<vmem>>, vector<16x32xf32>
    %cst = arith.constant dense<0.000000e+00> : vector<2x32xf32>
    %2 = tpu.matmul %0, %1, %cst {dimension_numbers = #tpu.dot_dimension_numbers<[1], [0], [0], [1], [0, 0, 1, 1], [], []>} : vector<2x16xf32>, vector<16x32xf32>, vector<2x32xf32> -> vector<2x32xf32>
    %c0_3 = arith.constant 0 : index
    %c0_4 = arith.constant 0 : index
    %3 = vector.load %arg2[%c0_3, %c0_4] : memref<2x4xf32, #tpu.memory_space<vmem>>, vector<2x4xf32>
    %c0_5 = arith.constant 0 : index
    %c0_6 = arith.constant 0 : index
    %4 = vector.load %arg4[%c0_5, %c0_6] : memref<4x32xf32, #tpu.memory_space<vmem>>, vector<4x32xf32>
    %cst_7 = arith.constant dense<0.000000e+00> : vector<2x32xf32>
    %5 = tpu.matmul %3, %4, %cst_7 {dimension_numbers = #tpu.dot_dimension_numbers<[1], [0], [0], [1], [0, 0, 1, 1], [], []>} : vector<2x4xf32>, vector<4x32xf32>, vector<2x32xf32> -> vector<2x32xf32>
    %6 = arith.addf %2, %5 : vector<2x32xf32>
    %c0_8 = arith.constant 0 : index
    %c0_9 = arith.constant 0 : index
    %7 = vector.load %arg5[%c0_8, %c0_9] : memref<1x32xf32, #tpu.memory_space<vmem>>, vector<1x32xf32>
    %8 = vector.broadcast %7 : vector<1x32xf32> to vector<2x32xf32>
    %9 = arith.addf %6, %8 : vector<2x32xf32>
    %cst_10 = arith.constant 0.000000e+00 : f32
    %10 = vector.broadcast %cst_10 : f32 to vector<2x32xf32>
    %11 = arith.maximumf %9, %10 : vector<2x32xf32>
    %c0_11 = arith.constant 0 : index
    %c0_12 = arith.constant 0 : index
    %12 = vector.load %arg6[%c0_11, %c0_12] : memref<32x32xf32, #tpu.memory_space<vmem>>, vector<32x32xf32>
    %cst_13 = arith.constant dense<0.000000e+00> : vector<2x32xf32>
    %13 = tpu.matmul %11, %12, %cst_13 {dimension_numbers = #tpu.dot_dimension_numbers<[1], [0], [0], [1], [0, 0, 1, 1], [], []>} : vector<2x32xf32>, vector<32x32xf32>, vector<2x32xf32> -> vector<2x32xf32>
    %c0_14 = arith.constant 0 : index
    %c0_15 = arith.constant 0 : index
    %14 = vector.load %arg7[%c0_14, %c0_15] : memref<1x32xf32, #tpu.memory_space<vmem>>, vector<1x32xf32>
    %15 = vector.broadcast %14 : vector<1x32xf32> to vector<2x32xf32>
    %16 = arith.addf %13, %15 : vector<2x32xf32>
    %cst_16 = arith.constant 0.000000e+00 : f32
    %17 = vector.broadcast %cst_16 : f32 to vector<2x32xf32>
    %18 = arith.maximumf %16, %17 : vector<2x32xf32>
    %c0_17 = arith.constant 0 : index
    %c0_18 = arith.constant 0 : index
    %19 = vector.load %arg8[%c0_17, %c0_18] : memref<32x128xf32, #tpu.memory_space<vmem>>, vector<32x128xf32>
    %cst_19 = arith.constant dense<0.000000e+00> : vector<2x128xf32>
    %20 = tpu.matmul %18, %19, %cst_19 {dimension_numbers = #tpu.dot_dimension_numbers<[1], [0], [0], [1], [0, 0, 1, 1], [], []>} : vector<2x32xf32>, vector<32x128xf32>, vector<2x128xf32> -> vector<2x128xf32>
    %c0_20 = arith.constant 0 : index
    %c0_21 = arith.constant 0 : index
    %21 = vector.load %arg9[%c0_20, %c0_21] : memref<1x128xf32, #tpu.memory_space<vmem>>, vector<1x128xf32>
    %22 = vector.broadcast %21 : vector<1x128xf32> to vector<2x128xf32>
    %23 = arith.addf %20, %22 : vector<2x128xf32>
    %c0_22 = arith.constant 0 : index
    %c0_23 = arith.constant 0 : index
    %24 = vector.load %arg10[%c0_22, %c0_23] : memref<2x128xf32, #tpu.memory_space<vmem>>, vector<2x128xf32>
    tpu.vector_store %arg10[%c0_22, %c0_23], %23 {strides = array<i32>} : memref<2x128xf32, #tpu.memory_space<vmem>>, vector<2x128xf32>,
    return
  }
  func.func @transform_0(%arg0: i32) -> (i32, i32) {
    %c0_i32 = arith.constant 0 : i32
    %c0_i32_0 = arith.constant 0 : i32
    return %arg0, %c0_i32 : i32, i32
  }
  func.func @transform_1(%arg0: i32) -> (i32, i32) {
    %c0_i32 = arith.constant 0 : i32
    %c0_i32_0 = arith.constant 0 : i32
    return %arg0, %c0_i32 : i32, i32
  }
  func.func @transform_2(%arg0: i32) -> (i32, i32) {
    %c0_i32 = arith.constant 0 : i32
    %c0_i32_0 = arith.constant 0 : i32
    %c0_i32_1 = arith.constant 0 : i32
    return %c0_i32, %c0_i32_0 : i32, i32
  }
  func.func @transform_3(%arg0: i32) -> (i32, i32) {
    %c0_i32 = arith.constant 0 : i32
    %c0_i32_0 = arith.constant 0 : i32
    %c0_i32_1 = arith.constant 0 : i32
    return %c0_i32, %c0_i32_0 : i32, i32
  }
  func.func @transform_4(%arg0: i32) -> (i32, i32) {
    %c0_i32 = arith.constant 0 : i32
    %c0_i32_0 = arith.constant 0 : i32
    %c0_i32_1 = arith.constant 0 : i32
    return %c0_i32, %c0_i32_0 : i32, i32
  }
  func.func @transform_5(%arg0: i32) -> (i32, i32) {
    %c0_i32 = arith.constant 0 : i32
    %c0_i32_0 = arith.constant 0 : i32
    %c0_i32_1 = arith.constant 0 : i32
    return %c0_i32, %c0_i32_0 : i32, i32
  }
  func.func @transform_6(%arg0: i32) -> (i32, i32) {
    %c0_i32 = arith.constant 0 : i32
    %c0_i32_0 = arith.constant 0 : i32
    %c0_i32_1 = arith.constant 0 : i32
    return %c0_i32, %c0_i32_0 : i32, i32
  }
  func.func @transform_7(%arg0: i32) -> (i32, i32) {
    %c0_i32 = arith.constant 0 : i32
    %c0_i32_0 = arith.constant 0 : i32
    %c0_i32_1 = arith.constant 0 : i32
    return %c0_i32, %c0_i32_0 : i32, i32
  }
  func.func @transform_8(%arg0: i32) -> (i32, i32) {
    %c0_i32 = arith.constant 0 : i32
    %c0_i32_0 = arith.constant 0 : i32
    %c0_i32_1 = arith.constant 0 : i32
    return %c0_i32, %c0_i32_0 : i32, i32
  }
  func.func @transform_9(%arg0: i32) -> (i32, i32) {
    %c0_i32 = arith.constant 0 : i32
    %c0_i32_0 = arith.constant 0 : i32
    return %arg0, %c0_i32 : i32, i32
  }
}

</mosaic_0001>

<llo_original>
// kernel: tpu_custom_call.1
$region0: #{tpu_custom_call.1}
  #allocation0 [shape = 'u32[]', space=smem, size = 0x4, offset = 0x4, fixed_abs, tag = 'smem constant byte address 0x4 - core index']
  #allocation1 [shape = 'u32[144,128]{1,0:T(1,128)}', space=vmem, size = 0x12000, scoped, tag = 'internal scratch']
  %s0 = inlined_call_operand.hbm [shape: f32[2,16], index: 0, kind: input, shape index: {}]
  %s1 = inlined_call_operand.vmem [shape: f32[2,4], index: 1, kind: input, shape index: {}]
  %s2 = inlined_call_operand.hbm [shape: f32[16,32], index: 2, kind: input, shape index: {}]
  %s3 = inlined_call_operand.vmem [shape: f32[4,32], index: 3, kind: input, shape index: {}]
  %s4 = inlined_call_operand.vmem [shape: f32[1,32], index: 4, kind: input, shape index: {}]
  %s5 = inlined_call_operand.hbm [shape: f32[32,32], index: 5, kind: input, shape index: {}]
  %s6 = inlined_call_operand.vmem [shape: f32[1,32], index: 6, kind: input, shape index: {}]
  %s7 = inlined_call_operand.hbm [shape: f32[32,128], index: 7, kind: input, shape index: {}]
  %s8 = inlined_call_operand.vmem [shape: f32[1,128], index: 8, kind: input, shape index: {}]
  %s9 = inlined_call_operand.hbm [shape: f32[2,128], index: 9, kind: output, shape index: {}]
  %s10 = sld [smem:[#allocation0]]
  $region62: #{tpu_custom_call.1} parent=0
    _
  %s12 = ssub.s32 1, %s10
  %s13 = scalar_select 0, %s12, %s10
  $region1: #{tpu_custom_call.1} parent=0
    #allocation2 [shape = 'u8[1024]{0}', space=vmem, size = 0x400, scoped, tag = 'input window, operand 0, single buffered']
    #allocation3 [shape = 's32[1]{0}', space=sflag, size = 0x4, scoped, tag = 'scoped memory for tpu_custom_call.1']
    #allocation4 [shape = 's32[1]{0}', space=sflag, size = 0x4, scoped, tag = 'scoped memory for tpu_custom_call.1']
    #allocation5 [shape = 'u8[8192]{0}', space=vmem, size = 0x2000, scoped, tag = 'input window, operand 2, single buffered']
    #allocation6 [shape = 's32[1]{0}', space=sflag, size = 0x4, scoped, tag = 'scoped memory for tpu_custom_call.1']
    #allocation7 [shape = 'u8[16384]{0}', space=vmem, size = 0x4000, scoped, tag = 'input window, operand 5, single buffered']
    #allocation8 [shape = 'u8[16384]{0}', space=vmem, size = 0x4000, scoped, tag = 'input window, operand 7, single buffered']
    #allocation9 [shape = 's32[1]{0}', space=sflag, size = 0x4, scoped, tag = 'scoped memory for tpu_custom_call.1']
    #allocation10 [shape = 'u8[1024]{0}', space=vmem, size = 0x400, scoped, tag = 'output window, operand 0, single buffered']
    %14 = vsyncpa [#allocation3], 0
    %15 = vsyncpa [#allocation6], 0
    %16 = vsyncpa [#allocation9], 0
    %17 = vsyncpa [#allocation4], 0
    // Predicated region
    $region2: #{tpu_custom_call.1} parent=1 // pred_check
      _
    $region3: #{tpu_custom_call.1} parent=1 // pred_check_branch
      %19 = sbr.rel (0) target = $region5
    $region4: #{tpu_custom_call.1} parent=1 // pred_region
      %s21 = ssub.s32 32, 32
      %22 = vsyncadd [#allocation3], %s21
      %s24 = sshll.u32 [#allocation2], 4
      %s25 = int_to_ptr.vmem [resolvable:$true] %s24
      %27 = dma.hbm_to_vmem [thread:$0]  %s0, 32, %s25, [#allocation3]
    $region5: #{tpu_custom_call.1} parent=1 // pred_fallthru
      _
    // Predicated region
    $region6: #{tpu_custom_call.1} parent=1 // pred_check
      _
    $region7: #{tpu_custom_call.1} parent=1 // pred_check_branch
      %29 = sbr.rel (0) target = $region9
    $region8: #{tpu_custom_call.1} parent=1 // pred_region
      _
    $region9: #{tpu_custom_call.1} parent=1 // pred_fallthru
      _
    // Predicated region
    $region10: #{tpu_custom_call.1} parent=1 // pred_check
      _
    $region11: #{tpu_custom_call.1} parent=1 // pred_check_branch
      %31 = sbr.rel (0) target = $region13
    $region12: #{tpu_custom_call.1} parent=1 // pred_region
      %s33 = ssub.s32 256, 256
      %34 = vsyncadd [#allocation6], %s33
      %s35 = sshll.u32 [#allocation5], 4
      %s36 = int_to_ptr.vmem [resolvable:$true] %s35
      %41 = dma.hbm_to_vmem [thread:$0]  %s2, 256, %s36, [#allocation6], 128, 128, 8
    $region13: #{tpu_custom_call.1} parent=1 // pred_fallthru
      _
    // Predicated region
    $region14: #{tpu_custom_call.1} parent=1 // pred_check
      _
    $region15: #{tpu_custom_call.1} parent=1 // pred_check_branch
      %43 = sbr.rel (0) target = $region17
    $region16: #{tpu_custom_call.1} parent=1 // pred_region
      _
    $region17: #{tpu_custom_call.1} parent=1 // pred_fallthru
      _
    // Predicated region
    $region18: #{tpu_custom_call.1} parent=1 // pred_check
      _
    $region19: #{tpu_custom_call.1} parent=1 // pred_check_branch
      %45 = sbr.rel (0) target = $region21
    $region20: #{tpu_custom_call.1} parent=1 // pred_region
      _
    $region21: #{tpu_custom_call.1} parent=1 // pred_fallthru
      _
    // Predicated region
    $region22: #{tpu_custom_call.1} parent=1 // pred_check
      _
    $region23: #{tpu_custom_call.1} parent=1 // pred_check_branch
      %47 = sbr.rel (0) target = $region25
    $region24: #{tpu_custom_call.1} parent=1 // pred_region
      %s49 = ssub.s32 512, 512
      %50 = vsyncadd [#allocation6], %s49
      %s51 = sshll.u32 [#allocation7], 4
      %s52 = int_to_ptr.vmem [resolvable:$true] %s51
      %57 = dma.hbm_to_vmem [thread:$0]  %s5, 512, %s52, [#allocation6], 128, 128, 8
    $region25: #{tpu_custom_call.1} parent=1 // pred_fallthru
      _
    // Predicated region
    $region26: #{tpu_custom_call.1} parent=1 // pred_check
      _
    $region27: #{tpu_custom_call.1} parent=1 // pred_check_branch
      %59 = sbr.rel (0) target = $region29
    $region28: #{tpu_custom_call.1} parent=1 // pred_region
      _
    $region29: #{tpu_custom_call.1} parent=1 // pred_fallthru
      _
    // Predicated region
    $region30: #{tpu_custom_call.1} parent=1 // pred_check
      _
    $region31: #{tpu_custom_call.1} parent=1 // pred_check_branch
      %61 = sbr.rel (0) target = $region33
    $region32: #{tpu_custom_call.1} parent=1 // pred_region
      %s63 = ssub.s32 512, 512
      %64 = vsyncadd [#allocation9], %s63
      %s65 = sshll.u32 [#allocation8], 4
      %s66 = int_to_ptr.vmem [resolvable:$true] %s65
      %71 = dma.hbm_to_vmem [thread:$0]  %s7, 512, %s66, [#allocation9], 128, 128, 8
    $region33: #{tpu_custom_call.1} parent=1 // pred_fallthru
      _
    // Predicated region
    $region34: #{tpu_custom_call.1} parent=1 // pred_check
      _
    $region35: #{tpu_custom_call.1} parent=1 // pred_check_branch
      %73 = sbr.rel (0) target = $region37
    $region36: #{tpu_custom_call.1} parent=1 // pred_region
      _
    $region37: #{tpu_custom_call.1} parent=1 // pred_fallthru
      _
    // Predicated region
    $region38: #{tpu_custom_call.1} parent=1 // pred_check
      _
    $region39: #{tpu_custom_call.1} parent=1 // pred_check_branch
      %75 = sbr.rel (0) target = $region41
    $region40: #{tpu_custom_call.1} parent=1 // pred_region
      %76 = dma.done [#allocation3], 32
    $region41: #{tpu_custom_call.1} parent=1 // pred_fallthru
      _
    // Predicated region
    $region42: #{tpu_custom_call.1} parent=1 // pred_check
      _
    $region43: #{tpu_custom_call.1} parent=1 // pred_check_branch
      %78 = sbr.rel (0) target = $region45
    $region44: #{tpu_custom_call.1} parent=1 // pred_region
      %79 = dma.done [#allocation6], 256
    $region45: #{tpu_custom_call.1} parent=1 // pred_fallthru
      _
    // Predicated region
    $region46: #{tpu_custom_call.1} parent=1 // pred_check
      _
    $region47: #{tpu_custom_call.1} parent=1 // pred_check_branch
      %81 = sbr.rel (0) target = $region49
    $region48: #{tpu_custom_call.1} parent=1 // pred_region
      %82 = dma.done [#allocation6], 512
    $region49: #{tpu_custom_call.1} parent=1 // pred_fallthru
      _
    // Predicated region
    $region50: #{tpu_custom_call.1} parent=1 // pred_check
      _
    $region51: #{tpu_custom_call.1} parent=1 // pred_check_branch
      %84 = sbr.rel (0) target = $region53
    $region52: #{tpu_custom_call.1} parent=1 // pred_region
      %85 = dma.done [#allocation9], 512
    $region53: #{tpu_custom_call.1} parent=1 // pred_fallthru
      _
    %v86 = vld [vmem:[#allocation2] sm:$0x3]
    %v87 = vld [vmem:[#allocation5] sm:$0xff]
    %v88 = vld [vmem:[#allocation5 + $0x8] sm:$0xff]
    %v89 = vld [vmem:[%s1] sm:$0x3]
    %v90 = vld [vmem:[%s3] sm:$0xf]
    %vm91 = vcmask 31744
    %v93 = vsel %vm91, %v89, 0
    %vm95 = vcmask 1043456
    %v97 = vsel %vm95, %v90, 0
    %99 = vmatprep.subr.mxu0 0.0
    %100 = vmatpush1.msra.mxu0 %v97
    %101 = vmatprep.subr.mxu0 0.0
    %102 = vmatpush1.msra.mxu0 0.0
    %103 = vmatprep.subr.mxu0 0.0
    %104 = vmatpush1.msra.mxu0 0.0
    %105 = vmatprep.subr.mxu0 0.0
    %106 = vmatpush1.msra.mxu0 0.0
    %107 = vmatprep.subr.mxu0 0.0
    %108 = vmatpush1.msra.mxu0 0.0
    %109 = vmatprep.subr.mxu0 0.0
    %110 = vmatpush1.msra.mxu0 0.0
    %111 = vmatprep.subr.mxu0 0.0
    %112 = vmatpush1.msra.mxu0 0.0
    %113 = vmatprep.subr.mxu0 0.0
    %114 = vmatpush1.msra.mxu0 0.0
    %115 = vmatprep.subr.mxu0 0.0
    %116 = vmatpush1.msra.mxu0 0.0
    %117 = vmatprep.subr.mxu0 0.0
    %118 = vmatpush1.msra.mxu0 0.0
    %119 = vmatprep.subr.mxu0 0.0
    %120 = vmatpush1.msra.mxu0 0.0
    %121 = vmatprep.subr.mxu0 0.0
    %122 = vmatpush1.msra.mxu0 0.0
    %123 = vmatprep.subr.mxu0 0.0
    %124 = vmatpush1.msra.mxu0 0.0
    %125 = vmatprep.subr.mxu0 0.0
    %126 = vmatpush1.msra.mxu0 0.0
    %127 = vmatprep.subr.mxu0 0.0
    %128 = vmatpush1.msra.mxu0 0.0
    %129 = vmatprep.subr.mxu0 0.0
    %130 = vmatpush1.msra.mxu0 0.0
    %131 = vmatprep.subr.mxu0 0.0
    %132 = vmatpush1.msra.mxu0 0.0
    %133 = vmatprep.subr.mxu0 0.0
    %134 = vmatpush1.msra.mxu0 0.0
    %135 = vmatprep.subr.mxu0 0.0
    %136 = vmatpush1.msra.mxu0 0.0
    %137 = vmatprep.subr.mxu0 0.0
    %138 = vmatpush1.msra.mxu0 0.0
    %139 = vmatprep.subr.mxu0 0.0
    %140 = vmatpush1.msra.mxu0 0.0
    %141 = vmatprep.subr.mxu0 0.0
    %142 = vmatpush1.msra.mxu0 0.0
    %143 = vmatprep.subr.mxu0 0.0
    %144 = vmatpush1.msra.mxu0 0.0
    %145 = vmatprep.subr.mxu0 0.0
    %146 = vmatpush1.msra.mxu0 0.0
    %147 = vmatprep.subr.mxu0 0.0
    %148 = vmatpush1.msra.mxu0 0.0
    %149 = vmatprep.subr.mxu0 0.0
    %150 = vmatpush1.msra.mxu0 0.0
    %151 = vmatprep.subr.mxu0 0.0
    %152 = vmatpush1.msra.mxu0 0.0
    %153 = vmatprep.subr.mxu0 0.0
    %154 = vmatpush1.msra.mxu0 0.0
    %155 = vmatprep.subr.mxu0 0.0
    %156 = vmatpush1.msra.mxu0 0.0
    %157 = vmatprep.subr.mxu0 0.0
    %158 = vmatpush1.msra.mxu0 0.0
    %159 = vmatprep.subr.mxu0 0.0
    %160 = vmatpush1.msra.mxu0 0.0
    %161 = vmatprep.subr.mxu0 0.0
    %162 = vmatpush1.msra.mxu0 0.0
    %163 = vmatprep.mubr.f32.mxu0 0.0
    %164 = vmatmul.mubr.f32.gmra.mrb[0].mxu0 %v93
    %v165 = vpop.f32.mrb[0].mxu0
    %v166 = vadd.f32 0.0, %v165
    %v167 = vpop.f32.mrb[0].mxu0
    %168 = vdwg.mxu0
    %vm169 = vcmask 130048
    %v171 = vsel %vm169, %v86, 0
    %173 = vmatprep.subr.mxu0 0.0
    %174 = vmatpush1.msra.mxu0 %v87
    %175 = vmatprep.subr.mxu0 0.0
    %176 = vmatpush1.msra.mxu0 %v88
    %177 = vmatprep.subr.mxu0 0.0
    %178 = vmatpush1.msra.mxu0 0.0
    %179 = vmatprep.subr.mxu0 0.0
    %180 = vmatpush1.msra.mxu0 0.0
    %181 = vmatprep.subr.mxu0 0.0
    %182 = vmatpush1.msra.mxu0 0.0
    %183 = vmatprep.subr.mxu0 0.0
    %184 = vmatpush1.msra.mxu0 0.0
    %185 = vmatprep.subr.mxu0 0.0
    %186 = vmatpush1.msra.mxu0 0.0
    %187 = vmatprep.subr.mxu0 0.0
    %188 = vmatpush1.msra.mxu0 0.0
    %189 = vmatprep.subr.mxu0 0.0
    %190 = vmatpush1.msra.mxu0 0.0
    %191 = vmatprep.subr.mxu0 0.0
    %192 = vmatpush1.msra.mxu0 0.0
    %193 = vmatprep.subr.mxu0 0.0
    %194 = vmatpush1.msra.mxu0 0.0
    %195 = vmatprep.subr.mxu0 0.0
    %196 = vmatpush1.msra.mxu0 0.0
    %197 = vmatprep.subr.mxu0 0.0
    %198 = vmatpush1.msra.mxu0 0.0
    %199 = vmatprep.subr.mxu0 0.0
    %200 = vmatpush1.msra.mxu0 0.0
    %201 = vmatprep.subr.mxu0 0.0
    %202 = vmatpush1.msra.mxu0 0.0
    %203 = vmatprep.subr.mxu0 0.0
    %204 = vmatpush1.msra.mxu0 0.0
    %205 = vmatprep.subr.mxu0 0.0
    %206 = vmatpush1.msra.mxu0 0.0
    %207 = vmatprep.subr.mxu0 0.0
    %208 = vmatpush1.msra.mxu0 0.0
    %209 = vmatprep.subr.mxu0 0.0
    %210 = vmatpush1.msra.mxu0 0.0
    %211 = vmatprep.subr.mxu0 0.0
    %212 = vmatpush1.msra.mxu0 0.0
    %213 = vmatprep.subr.mxu0 0.0
    %214 = vmatpush1.msra.mxu0 0.0
    %215 = vmatprep.subr.mxu0 0.0
    %216 = vmatpush1.msra.mxu0 0.0
    %217 = vmatprep.subr.mxu0 0.0
    %218 = vmatpush1.msra.mxu0 0.0
    %219 = vmatprep.subr.mxu0 0.0
    %220 = vmatpush1.msra.mxu0 0.0
    %221 = vmatprep.subr.mxu0 0.0
    %222 = vmatpush1.msra.mxu0 0.0
    %223 = vmatprep.subr.mxu0 0.0
    %224 = vmatpush1.msra.mxu0 0.0
    %225 = vmatprep.subr.mxu0 0.0
    %226 = vmatpush1.msra.mxu0 0.0
    %227 = vmatprep.subr.mxu0 0.0
    %228 = vmatpush1.msra.mxu0 0.0
    %229 = vmatprep.subr.mxu0 0.0
    %230 = vmatpush1.msra.mxu0 0.0
    %231 = vmatprep.subr.mxu0 0.0
    %232 = vmatpush1.msra.mxu0 0.0
    %233 = vmatprep.subr.mxu0 0.0
    %234 = vmatpush1.msra.mxu0 0.0
    %235 = vmatprep.subr.mxu0 0.0
    %236 = vmatpush1.msra.mxu0 0.0
    %237 = vmatprep.mubr.f32.mxu0 0.0
    %238 = vmatmul.mubr.f32.gmra.mrb[0].mxu0 %v171
    %v239 = vpop.f32.mrb[0].mxu0
    %v240 = vadd.f32 %v166, %v239
    %v241 = vpop.f32.mrb[0].mxu0
    %242 = vdwg.mxu0
    %v243 = vld [vmem:[%s4] sm:$0x1]
    %v245 = vlaneseq
    %v246 = vshrl.u32 %v245, 7
    %v247 = vsub.s32 0, %v246
    %v248 = vrot.slane %v243, %v247
    %v250 = vadd.f32 %v240, %v248
    %v251 = vmax.f32 %v250, 0.0
    %v252 = vld [vmem:[#allocation7] sm:$0xff]
    %v253 = vld [vmem:[#allocation7 + $0x8] sm:$0xff]
    %v254 = vld [vmem:[#allocation7 + $0x10] sm:$0xff]
    %v255 = vld [vmem:[#allocation7 + $0x18] sm:$0xff]
    %v256 = vld [vmem:[%s6] sm:$0x1]
    %v258 = vlaneseq
    %v259 = vshrl.u32 %v258, 7
    %v260 = vsub.s32 0, %v259
    %v261 = vrot.slane %v256, %v260
    %vm263 = vcmask 261120
    %v265 = vsel %vm263, %v251, 0
    %267 = vmatprep.subr.mxu0 0.0
    %268 = vmatpush1.msra.mxu0 %v252
    %269 = vmatprep.subr.mxu0 0.0
    %270 = vmatpush1.msra.mxu0 %v253
    %271 = vmatprep.subr.mxu0 0.0
    %272 = vmatpush1.msra.mxu0 %v254
    %273 = vmatprep.subr.mxu0 0.0
    %274 = vmatpush1.msra.mxu0 %v255
    %275 = vmatprep.subr.mxu0 0.0
    %276 = vmatpush1.msra.mxu0 0.0
    %277 = vmatprep.subr.mxu0 0.0
    %278 = vmatpush1.msra.mxu0 0.0
    %279 = vmatprep.subr.mxu0 0.0
    %280 = vmatpush1.msra.mxu0 0.0
    %281 = vmatprep.subr.mxu0 0.0
    %282 = vmatpush1.msra.mxu0 0.0
    %283 = vmatprep.subr.mxu0 0.0
    %284 = vmatpush1.msra.mxu0 0.0
    %285 = vmatprep.subr.mxu0 0.0
    %286 = vmatpush1.msra.mxu0 0.0
    %287 = vmatprep.subr.mxu0 0.0
    %288 = vmatpush1.msra.mxu0 0.0
    %289 = vmatprep.subr.mxu0 0.0
    %290 = vmatpush1.msra.mxu0 0.0
    %291 = vmatprep.subr.mxu0 0.0
    %292 = vmatpush1.msra.mxu0 0.0
    %293 = vmatprep.subr.mxu0 0.0
    %294 = vmatpush1.msra.mxu0 0.0
    %295 = vmatprep.subr.mxu0 0.0
    %296 = vmatpush1.msra.mxu0 0.0
    %297 = vmatprep.subr.mxu0 0.0
    %298 = vmatpush1.msra.mxu0 0.0
    %299 = vmatprep.subr.mxu0 0.0
    %300 = vmatpush1.msra.mxu0 0.0
    %301 = vmatprep.subr.mxu0 0.0
    %302 = vmatpush1.msra.mxu0 0.0
    %303 = vmatprep.subr.mxu0 0.0
    %304 = vmatpush1.msra.mxu0 0.0
    %305 = vmatprep.subr.mxu0 0.0
    %306 = vmatpush1.msra.mxu0 0.0
    %307 = vmatprep.subr.mxu0 0.0
    %308 = vmatpush1.msra.mxu0 0.0
    %309 = vmatprep.subr.mxu0 0.0
    %310 = vmatpush1.msra.mxu0 0.0
    %311 = vmatprep.subr.mxu0 0.0
    %312 = vmatpush1.msra.mxu0 0.0
    %313 = vmatprep.subr.mxu0 0.0
    %314 = vmatpush1.msra.mxu0 0.0
    %315 = vmatprep.subr.mxu0 0.0
    %316 = vmatpush1.msra.mxu0 0.0
    %317 = vmatprep.subr.mxu0 0.0
    %318 = vmatpush1.msra.mxu0 0.0
    %319 = vmatprep.subr.mxu0 0.0
    %320 = vmatpush1.msra.mxu0 0.0
    %321 = vmatprep.subr.mxu0 0.0
    %322 = vmatpush1.msra.mxu0 0.0
    %323 = vmatprep.subr.mxu0 0.0
    %324 = vmatpush1.msra.mxu0 0.0
    %325 = vmatprep.subr.mxu0 0.0
    %326 = vmatpush1.msra.mxu0 0.0
    %327 = vmatprep.subr.mxu0 0.0
    %328 = vmatpush1.msra.mxu0 0.0
    %329 = vmatprep.subr.mxu0 0.0
    %330 = vmatpush1.msra.mxu0 0.0
    %331 = vmatprep.mubr.f32.mxu0 0.0
    %332 = vmatmul.mubr.f32.gmra.mrb[0].mxu0 %v265
    %v333 = vpop.f32.mrb[0].mxu0
    %v334 = vadd.f32 %v261, %v333
    %v335 = vpop.f32.mrb[0].mxu0
    %336 = vdwg.mxu0
    %v337 = vmax.f32 %v334, 0.0
    %v338 = vld [vmem:[#allocation8] sm:$0xff]
    %v339 = vld [vmem:[#allocation8 + $0x8] sm:$0xff]
    %v340 = vld [vmem:[#allocation8 + $0x10] sm:$0xff]
    %v341 = vld [vmem:[#allocation8 + $0x18] sm:$0xff]
    %v342 = vld [vmem:[%s8] sm:$0x1]
    %v344 = vlaneseq
    %v345 = vshrl.u32 %v344, 7
    %v346 = vsub.s32 0, %v345
    %v347 = vrot.slane %v342, %v346
    %v350 = vsel %vm263, %v337, 0
    %352 = vmatprep.subr.mxu0 0.0
    %353 = vmatpush1.msra.mxu0 %v338
    %354 = vmatprep.subr.mxu0 0.0
    %355 = vmatpush1.msra.mxu0 %v339
    %356 = vmatprep.subr.mxu0 0.0
    %357 = vmatpush1.msra.mxu0 %v340
    %358 = vmatprep.subr.mxu0 0.0
    %359 = vmatpush1.msra.mxu0 %v341
    %360 = vmatprep.subr.mxu0 0.0
    %361 = vmatpush1.msra.mxu0 0.0
    %362 = vmatprep.subr.mxu0 0.0
    %363 = vmatpush1.msra.mxu0 0.0
    %364 = vmatprep.subr.mxu0 0.0
    %365 = vmatpush1.msra.mxu0 0.0
    %366 = vmatprep.subr.mxu0 0.0
    %367 = vmatpush1.msra.mxu0 0.0
    %368 = vmatprep.subr.mxu0 0.0
    %369 = vmatpush1.msra.mxu0 0.0
    %370 = vmatprep.subr.mxu0 0.0
    %371 = vmatpush1.msra.mxu0 0.0
    %372 = vmatprep.subr.mxu0 0.0
    %373 = vmatpush1.msra.mxu0 0.0
    %374 = vmatprep.subr.mxu0 0.0
    %375 = vmatpush1.msra.mxu0 0.0
    %376 = vmatprep.subr.mxu0 0.0
    %377 = vmatpush1.msra.mxu0 0.0
    %378 = vmatprep.subr.mxu0 0.0
    %379 = vmatpush1.msra.mxu0 0.0
    %380 = vmatprep.subr.mxu0 0.0
    %381 = vmatpush1.msra.mxu0 0.0
    %382 = vmatprep.subr.mxu0 0.0
    %383 = vmatpush1.msra.mxu0 0.0
    %384 = vmatprep.subr.mxu0 0.0
    %385 = vmatpush1.msra.mxu0 0.0
    %386 = vmatprep.subr.mxu0 0.0
    %387 = vmatpush1.msra.mxu0 0.0
    %388 = vmatprep.subr.mxu0 0.0
    %389 = vmatpush1.msra.mxu0 0.0
    %390 = vmatprep.subr.mxu0 0.0
    %391 = vmatpush1.msra.mxu0 0.0
    %392 = vmatprep.subr.mxu0 0.0
    %393 = vmatpush1.msra.mxu0 0.0
    %394 = vmatprep.subr.mxu0 0.0
    %395 = vmatpush1.msra.mxu0 0.0
    %396 = vmatprep.subr.mxu0 0.0
    %397 = vmatpush1.msra.mxu0 0.0
    %398 = vmatprep.subr.mxu0 0.0
    %399 = vmatpush1.msra.mxu0 0.0
    %400 = vmatprep.subr.mxu0 0.0
    %401 = vmatpush1.msra.mxu0 0.0
    %402 = vmatprep.subr.mxu0 0.0
    %403 = vmatpush1.msra.mxu0 0.0
    %404 = vmatprep.subr.mxu0 0.0
    %405 = vmatpush1.msra.mxu0 0.0
    %406 = vmatprep.subr.mxu0 0.0
    %407 = vmatpush1.msra.mxu0 0.0
    %408 = vmatprep.subr.mxu0 0.0
    %409 = vmatpush1.msra.mxu0 0.0
    %410 = vmatprep.subr.mxu0 0.0
    %411 = vmatpush1.msra.mxu0 0.0
    %412 = vmatprep.subr.mxu0 0.0
    %413 = vmatpush1.msra.mxu0 0.0
    %414 = vmatprep.subr.mxu0 0.0
    %415 = vmatpush1.msra.mxu0 0.0
    %416 = vmatprep.mubr.f32.mxu0 0.0
    %417 = vmatmul.mubr.f32.gmra.mrb[0].mxu0 %v350
    %v418 = vpop.f32.mrb[0].mxu0
    %v419 = vadd.f32 %v347, %v418
    %v420 = vpop.f32.mrb[0].mxu0
    %421 = vdwg.mxu0
    %422 = vst [vmem:[#allocation10] sm:$0x3] %v419
    // Predicated region
    $region54: #{tpu_custom_call.1} parent=1 // pred_check
      _
    $region55: #{tpu_custom_call.1} parent=1 // pred_check_branch
      %424 = sbr.rel (0) target = $region57
    $region56: #{tpu_custom_call.1} parent=1 // pred_region
      %s426 = ssub.s32 32, 32
      %427 = vsyncadd [#allocation4], %s426
      %s429 = sshll.u32 [#allocation10], 4
      %s430 = int_to_ptr.vmem [resolvable:$true] %s429
      %432 = dma.vmem_to_hbm [thread:$0]  %s430, 32, %s9, [#allocation4]
    $region57: #{tpu_custom_call.1} parent=1 // pred_fallthru
      _
    // Predicated region
    $region58: #{tpu_custom_call.1} parent=1 // pred_check
      _
    $region59: #{tpu_custom_call.1} parent=1 // pred_check_branch
      %434 = sbr.rel (0) target = $region61
    $region60: #{tpu_custom_call.1} parent=1 // pred_region
      %435 = dma.done [#allocation4], 32
    $region61: #{tpu_custom_call.1} parent=1 // pred_fallthru
      _
    %436 = vsyncpa [#allocation3], 1
    %437 = vsyncpa [#allocation6], 1
    %438 = vsyncpa [#allocation9], 1
    %439 = vsyncpa [#allocation4], 1

</llo_original>
